<compile_context>
chip_gen: v7x
topology: tpu7x:2x2x1
jax: 0.10.0
libtpu: 0.0.40
codegen_flags: <defaults>
</compile_context>

<pallas_src>
import functools

import jax
import jax.numpy as jnp
import numpy as np
from jax.experimental import pallas as pl
from jax.experimental.pallas import tpu as pltpu


def _round_half_away(v):
    # Match CUDA round(): half away from zero.
    return jnp.where(v >= 0, jnp.floor(v + 0.5), jnp.ceil(v - 0.5))


def _pick_split(Vb):
    """Split the flat byte index as flat = hi * L + lo.

    L is a power of two (multiple of 128, the lane width), chosen near
    sqrt(3*Vb) so the VPU cost tile*(L + 3*H) of building the two one-hots is
    roughly balanced.  H is padded to a multiple of 16 for bf16 tiling.
    """
    L = 128
    while L < 2048 and L * L < 3 * Vb:
        L *= 2
    H = -(-Vb // L)
    H = max(16, -(-H // 16) * 16)
    return H, L


def _pack_mask(mask_grid):
    """Byte-pack a (Dx, Dy, Dz) bool grid along z into a resident bf16 slab.

    Returns maskM of shape (H, L) with maskM.reshape(-1)[b] equal to the byte
    holding voxels mask[i, j, 8*bz : 8*bz+8] for b = i*(Dy*Dzb) + j*Dzb + bz.
    All byte values (0..255) are exactly representable in bf16.
    """
    Dx, Dy, Dz = mask_grid.shape
    Dzb = -(-Dz // 8)
    Vb = Dx * Dy * Dzb
    H, L = _pick_split(Vb)

    m = jnp.asarray(mask_grid).astype(jnp.int32)
    m = jnp.pad(m, ((0, 0), (0, 0), (0, Dzb * 8 - Dz)))
    weights = jnp.array([1, 2, 4, 8, 16, 32, 64, 128], dtype=jnp.int32)
    mask_bytes = jnp.sum(m.reshape(Dx, Dy, Dzb, 8) * weights, axis=-1)  # 0..255
    mask_flat = mask_bytes.reshape(-1).astype(jnp.bfloat16)
    mask_flat = jnp.pad(mask_flat, (0, H * L - Vb))
    return mask_flat.reshape(H, L)


def _make_kernel(Dx, Dy, Dz, Dzb, H, L, tile):
    lo_bits = L.bit_length() - 1      # L is a power of two

    def kernel(scale_ref, shift_ref, mask_ref, xyz_ref, out_ref):
        xyz = xyz_ref[...]                       # (3, tile) f32, points on lanes
        x = xyz[0:1, :]
        y = xyz[1:2, :]
        z = xyz[2:3, :]

        fi = x * scale_ref[0] + shift_ref[0]     # (1, tile)
        fj = y * scale_ref[1] + shift_ref[1]
        fk = z * scale_ref[2] + shift_ref[2]

        i = _round_half_away(fi).astype(jnp.int32)
        j = _round_half_away(fj).astype(jnp.int32)
        k = _round_half_away(fk).astype(jnp.int32)

        valid = ((i >= 0) & (i < Dx) &
                 (j >= 0) & (j < Dy) &
                 (k >= 0) & (k < Dz))            # (1, tile) bool

        ic = jnp.clip(i, 0, Dx - 1)
        jc = jnp.clip(j, 0, Dy - 1)
        kc = jnp.clip(k, 0, Dz - 1)

        flat = ic * (Dy * Dzb) + jc * Dzb + (kc >> 3)   # byte index in [0, Vb)
        bit = kc & 7                                     # bit within the byte
        hi = flat >> lo_bits                             # (1, tile) in [0, H)
        lo = flat & (L - 1)                              # (1, tile) in [0, L)

        # --- step 1 (MXU): G[h, p] = bytes_flat[h*L + lo_p] -----------------
        lo_iota = jax.lax.broadcasted_iota(jnp.int32, (L, tile), 0)
        oh_lo = (lo_iota == lo).astype(jnp.bfloat16)
        g = jnp.dot(mask_ref[...], oh_lo,
                    preferred_element_type=jnp.float32)          # (H, tile) f32

        # --- step 2 (VPU): per-lane select of sublane hi_p, then bit extract -
        hi_iota = jax.lax.broadcasted_iota(jnp.int32, (H, tile), 0)
        byte_f = jnp.sum(jnp.where(hi_iota == hi, g, 0.0),
                         axis=0, keepdims=True)                  # (1, tile) f32
        byte_i = byte_f.astype(jnp.int32)                        # exact 0..255

        # Constant-shift 8-way select (avoids variable-amount shifts).
        hit = jnp.zeros_like(byte_i)
        for t in range(8):
            hit = jnp.where(bit == t, (byte_i >> t) & 1, hit)

        out_ref[...] = (valid & (hit == 1)).astype(jnp.int8)

    return kernel


@functools.partial(jax.jit, static_argnames=("dims", "tile"))
def _lookup_packed(maskM, xyz, xyz2ijk_scale, xyz2ijk_shift, *, dims, tile=512):
    """Core Pallas lookup on a pre-packed (H, L) bf16 byte slab."""
    Dx, Dy, Dz, Dzb = dims
    H, L = maskM.shape

    lead_shape = xyz.shape[:-1]
    pts = xyz.reshape(-1, 3).astype(jnp.float32)
    N = pts.shape[0]
    n_tiles = max(1, -(-N // tile))
    Np = n_tiles * tile
    pts_p = jnp.pad(pts, ((0, Np - N), (0, 0)))
    xyz_t = pts_p.T                                     # (3, Np): points on lanes

    scale = xyz2ijk_scale.astype(jnp.float32)
    shift = xyz2ijk_shift.astype(jnp.float32)

    kernel = _make_kernel(Dx, Dy, Dz, Dzb, H, L, tile)

    out = pl.pallas_call(
        kernel,
        out_shape=jax.ShapeDtypeStruct((1, Np), jnp.int8),
        grid=(n_tiles,),
        in_specs=[
            pl.BlockSpec(memory_space=pltpu.MemorySpace.SMEM),   # scale (3,)
            pl.BlockSpec(memory_space=pltpu.MemorySpace.SMEM),   # shift (3,)
            pl.BlockSpec((H, L), lambda t: (0, 0)),              # packed mask
            pl.BlockSpec((3, tile), lambda t: (0, t)),           # xyz (3, tile)
        ],
        out_specs=pl.BlockSpec((1, tile), lambda t: (0, t)),
        compiler_params=pltpu.CompilerParams(
            dimension_semantics=("parallel",)),
    )(scale, shift, maskM, xyz_t)

    return out[0, :N].astype(bool).reshape(lead_shape)


def maskcache_lookup(mask_grid, xyz, xyz2ijk_scale, xyz2ijk_shift, *, tile=512):
    """Functional Pallas implementation of render_utils_cuda.maskcache_lookup.

    mask_grid: (Dx, Dy, Dz) bool
    xyz:       [..., 3] float
    returns:   [...] bool
    """
    Dx, Dy, Dz = mask_grid.shape
    Dzb = -(-Dz // 8)
    maskM = _pack_mask(mask_grid)
    return _lookup_packed(maskM, xyz, xyz2ijk_scale, xyz2ijk_shift,
                          dims=(Dx, Dy, Dz, Dzb), tile=tile)


class MaskCache:
    """JAX mirror of lib/tri_dvgo.MaskCache (non-checkpoint constructor path).

    Only the (mask, xyz_min, xyz_max) constructor is supported here; the
    checkpoint-loading branch (torch.load + max_pool3d on a saved density grid)
    is out of scope for a synthetic kernel.
    """
    # TODO(synk): checkpoint-loading path (F.max_pool3d + softplus alpha thresholding) not implemented.

    def __init__(self, mask, xyz_min, xyz_max):
        self.mask = jnp.asarray(mask).astype(bool)
        Dx, Dy, Dz = self.mask.shape
        self._dims = (Dx, Dy, Dz, -(-Dz // 8))
        self._maskM = _pack_mask(self.mask)     # pre-pack once, reused per call

        xyz_min = jnp.asarray(xyz_min, dtype=jnp.float32)
        xyz_max = jnp.asarray(xyz_max, dtype=jnp.float32)
        xyz_len = xyz_max - xyz_min
        grid_shape = jnp.asarray(self.mask.shape, dtype=jnp.float32)
        self.xyz2ijk_scale = (grid_shape - 1.0) / xyz_len
        self.xyz2ijk_shift = -xyz_min * self.xyz2ijk_scale

    def __call__(self, xyz):
        return _lookup_packed(self._maskM, xyz,
                              self.xyz2ijk_scale, self.xyz2ijk_shift,
                              dims=self._dims)


def _reference_lookup(mask_np, xyz_np, scale_np, shift_np):
    """Pure-numpy reference matching the CUDA kernel semantics."""
    lead = xyz_np.shape[:-1]
    pts = xyz_np.reshape(-1, 3).astype(np.float64)
    f = pts * scale_np[None, :] + shift_np[None, :]
    idx = np.where(f >= 0, np.floor(f + 0.5), np.ceil(f - 0.5)).astype(np.int64)
    Dx, Dy, Dz = mask_np.shape
    valid = ((idx[:, 0] >= 0) & (idx[:, 0] < Dx) &
             (idx[:, 1] >= 0) & (idx[:, 1] < Dy) &
             (idx[:, 2] >= 0) & (idx[:, 2] < Dz))
    ic = np.clip(idx[:, 0], 0, Dx - 1)
    jc = np.clip(idx[:, 1], 0, Dy - 1)
    kc = np.clip(idx[:, 2], 0, Dz - 1)
    out = np.where(valid, mask_np[ic, jc, kc], False)
    return out.reshape(lead)


if __name__ == "__main__":
    key = jax.random.PRNGKey(0)
    k_mask, k_xyz = jax.random.split(key)

    # Small deterministic mask grid and bounding box.
    Dx, Dy, Dz = 16, 16, 16
    mask_grid = jax.random.uniform(k_mask, (Dx, Dy, Dz)) > 0.5
    xyz_min = jnp.array([-1.0, -1.0, -1.0], dtype=jnp.float32)
    xyz_max = jnp.array([1.0, 1.0, 1.0], dtype=jnp.float32)

    mc = MaskCache(mask_grid, xyz_min, xyz_max)

    # Query points [..., 3]; range slightly larger than the box so some points
    # exercise the out-of-bounds -> False path.
    xyz = jax.random.uniform(k_xyz, (4, 50, 3), minval=-1.2, maxval=1.2)

    out = mc(xyz)
    out = jax.block_until_ready(out)

    ref = _reference_lookup(np.asarray(mask_grid), np.asarray(xyz),
                            np.asarray(mc.xyz2ijk_scale),
                            np.asarray(mc.xyz2ijk_shift))

    assert out.shape == xyz.shape[:-1], (out.shape, xyz.shape[:-1])
    assert out.dtype == jnp.bool_.dtype or out.dtype == np.bool_, out.dtype
    np.testing.assert_array_equal(np.asarray(out), ref)

    # Also exercise the functional entry point.
    out2 = jax.block_until_ready(
        maskcache_lookup(mask_grid, xyz, mc.xyz2ijk_scale, mc.xyz2ijk_shift))
    np.testing.assert_array_equal(np.asarray(out2), ref)

    print("KERNEL_OK")
</pallas_src>

<mosaic_0001>
module attributes {stable_mosaic.version = 11 : i64} {
  func.func @kernel(%arg0: i32, %arg1: memref<3xf32, #tpu.memory_space<smem>>, %arg2: memref<3xf32, #tpu.memory_space<smem>>, %arg3: memref<16x128xbf16, #tpu.memory_space<vmem>>, %arg4: memref<3x512xf32, #tpu.memory_space<vmem>>, %arg5: memref<1x512xi8, #tpu.memory_space<vmem>>) attributes {dimension_semantics = [#tpu.dimension_semantics<parallel>], iteration_bounds = array<i64: 1>, scalar_prefetch = 0 : i64, scratch_operands = 0 : i64, tpu.core_type = #tpu.core_type<tc>, window_params = [{transform_indices = @transform_0, window_bounds = array<i64: 3>}, {transform_indices = @transform_1, window_bounds = array<i64: 3>}, {pipeline_mode = #tpu.pipeline_mode<synchronous>, transform_indices = @transform_2, window_bounds = array<i64: 16, 128>}, {transform_indices = @transform_3, window_bounds = array<i64: 3, 512>}, {transform_indices = @transform_4, window_bounds = array<i64: 1, 512>}]} {
    %c0 = arith.constant 0 : index
    %c0_0 = arith.constant 0 : index
    %0 = vector.load %arg4[%c0, %c0_0] : memref<3x512xf32, #tpu.memory_space<vmem>>, vector<3x512xf32>
    %1 = vector.extract_strided_slice %0 {offsets = [0, 0], sizes = [1, 512], strides = [1, 1]} : vector<3x512xf32> to vector<1x512xf32>
    %2 = vector.extract_strided_slice %0 {offsets = [1, 0], sizes = [1, 512], strides = [1, 1]} : vector<3x512xf32> to vector<1x512xf32>
    %3 = vector.extract_strided_slice %0 {offsets = [2, 0], sizes = [1, 512], strides = [1, 1]} : vector<3x512xf32> to vector<1x512xf32>
    %c0_1 = arith.constant 0 : index
    %4 = memref.load %arg1[%c0_1] : memref<3xf32, #tpu.memory_space<smem>>
    %5 = vector.broadcast %4 : f32 to vector<1x512xf32>
    %6 = arith.mulf %1, %5 : vector<1x512xf32>
    %c0_2 = arith.constant 0 : index
    %7 = memref.load %arg2[%c0_2] : memref<3xf32, #tpu.memory_space<smem>>
    %8 = vector.broadcast %7 : f32 to vector<1x512xf32>
    %9 = arith.addf %6, %8 : vector<1x512xf32>
    %c1 = arith.constant 1 : index
    %10 = memref.load %arg1[%c1] : memref<3xf32, #tpu.memory_space<smem>>
    %11 = vector.broadcast %10 : f32 to vector<1x512xf32>
    %12 = arith.mulf %2, %11 : vector<1x512xf32>
    %c1_3 = arith.constant 1 : index
    %13 = memref.load %arg2[%c1_3] : memref<3xf32, #tpu.memory_space<smem>>
    %14 = vector.broadcast %13 : f32 to vector<1x512xf32>
    %15 = arith.addf %12, %14 : vector<1x512xf32>
    %c2 = arith.constant 2 : index
    %16 = memref.load %arg1[%c2] : memref<3xf32, #tpu.memory_space<smem>>
    %17 = vector.broadcast %16 : f32 to vector<1x512xf32>
    %18 = arith.mulf %3, %17 : vector<1x512xf32>
    %c2_4 = arith.constant 2 : index
    %19 = memref.load %arg2[%c2_4] : memref<3xf32, #tpu.memory_space<smem>>
    %20 = vector.broadcast %19 : f32 to vector<1x512xf32>
    %21 = arith.addf %18, %20 : vector<1x512xf32>
    %cst = arith.constant 0.000000e+00 : f32
    %22 = vector.broadcast %cst : f32 to vector<1x512xf32>
    %23 = arith.cmpf oge, %9, %22 : vector<1x512xf32>
    %cst_5 = arith.constant 5.000000e-01 : f32
    %24 = vector.broadcast %cst_5 : f32 to vector<1x512xf32>
    %25 = arith.addf %9, %24 : vector<1x512xf32>
    %26 = math.floor %25 : vector<1x512xf32>
    %cst_6 = arith.constant 5.000000e-01 : f32
    %27 = vector.broadcast %cst_6 : f32 to vector<1x512xf32>
    %28 = arith.subf %9, %27 : vector<1x512xf32>
    %29 = math.ceil %28 : vector<1x512xf32>
    %30 = arith.select %23, %26, %29 : vector<1x512xi1>, vector<1x512xf32>
    %31 = arith.fptosi %30 : vector<1x512xf32> to vector<1x512xi32>
    %cst_7 = arith.constant 0.000000e+00 : f32
    %32 = vector.broadcast %cst_7 : f32 to vector<1x512xf32>
    %33 = arith.cmpf oge, %15, %32 : vector<1x512xf32>
    %cst_8 = arith.constant 5.000000e-01 : f32
    %34 = vector.broadcast %cst_8 : f32 to vector<1x512xf32>
    %35 = arith.addf %15, %34 : vector<1x512xf32>
    %36 = math.floor %35 : vector<1x512xf32>
    %cst_9 = arith.constant 5.000000e-01 : f32
    %37 = vector.broadcast %cst_9 : f32 to vector<1x512xf32>
    %38 = arith.subf %15, %37 : vector<1x512xf32>
    %39 = math.ceil %38 : vector<1x512xf32>
    %40 = arith.select %33, %36, %39 : vector<1x512xi1>, vector<1x512xf32>
    %41 = arith.fptosi %40 : vector<1x512xf32> to vector<1x512xi32>
    %cst_10 = arith.constant 0.000000e+00 : f32
    %42 = vector.broadcast %cst_10 : f32 to vector<1x512xf32>
    %43 = arith.cmpf oge, %21, %42 : vector<1x512xf32>
    %cst_11 = arith.constant 5.000000e-01 : f32
    %44 = vector.broadcast %cst_11 : f32 to vector<1x512xf32>
    %45 = arith.addf %21, %44 : vector<1x512xf32>
    %46 = math.floor %45 : vector<1x512xf32>
    %cst_12 = arith.constant 5.000000e-01 : f32
    %47 = vector.broadcast %cst_12 : f32 to vector<1x512xf32>
    %48 = arith.subf %21, %47 : vector<1x512xf32>
    %49 = math.ceil %48 : vector<1x512xf32>
    %50 = arith.select %43, %46, %49 : vector<1x512xi1>, vector<1x512xf32>
    %51 = arith.fptosi %50 : vector<1x512xf32> to vector<1x512xi32>
    %c0_i32 = arith.constant 0 : i32
    %52 = vector.broadcast %c0_i32 : i32 to vector<1x512xi32>
    %53 = arith.cmpi sge, %31, %52 : vector<1x512xi32>
    %c16_i32 = arith.constant 16 : i32
    %54 = vector.broadcast %c16_i32 : i32 to vector<1x512xi32>
    %55 = arith.cmpi slt, %31, %54 : vector<1x512xi32>
    %56 = arith.andi %53, %55 : vector<1x512xi1>
    %c0_i32_13 = arith.constant 0 : i32
    %57 = vector.broadcast %c0_i32_13 : i32 to vector<1x512xi32>
    %58 = arith.cmpi sge, %41, %57 : vector<1x512xi32>
    %59 = arith.andi %56, %58 : vector<1x512xi1>
    %c16_i32_14 = arith.constant 16 : i32
    %60 = vector.broadcast %c16_i32_14 : i32 to vector<1x512xi32>
    %61 = arith.cmpi slt, %41, %60 : vector<1x512xi32>
    %62 = arith.andi %59, %61 : vector<1x512xi1>
    %c0_i32_15 = arith.constant 0 : i32
    %63 = vector.broadcast %c0_i32_15 : i32 to vector<1x512xi32>
    %64 = arith.cmpi sge, %51, %63 : vector<1x512xi32>
    %65 = arith.andi %62, %64 : vector<1x512xi1>
    %c16_i32_16 = arith.constant 16 : i32
    %66 = vector.broadcast %c16_i32_16 : i32 to vector<1x512xi32>
    %67 = arith.cmpi slt, %51, %66 : vector<1x512xi32>
    %68 = arith.andi %65, %67 : vector<1x512xi1>
    %c0_i32_17 = arith.constant 0 : i32
    %c15_i32 = arith.constant 15 : i32
    %69 = vector.broadcast %c0_i32_17 : i32 to vector<1x512xi32>
    %70 = arith.maxsi %69, %31 : vector<1x512xi32>
    %71 = vector.broadcast %c15_i32 : i32 to vector<1x512xi32>
    %72 = arith.minsi %71, %70 : vector<1x512xi32>
    %c0_i32_18 = arith.constant 0 : i32
    %c15_i32_19 = arith.constant 15 : i32
    %73 = vector.broadcast %c0_i32_18 : i32 to vector<1x512xi32>
    %74 = arith.maxsi %73, %41 : vector<1x512xi32>
    %75 = vector.broadcast %c15_i32_19 : i32 to vector<1x512xi32>
    %76 = arith.minsi %75, %74 : vector<1x512xi32>
    %c0_i32_20 = arith.constant 0 : i32
    %c15_i32_21 = arith.constant 15 : i32
    %77 = vector.broadcast %c0_i32_20 : i32 to vector<1x512xi32>
    %78 = arith.maxsi %77, %51 : vector<1x512xi32>
    %79 = vector.broadcast %c15_i32_21 : i32 to vector<1x512xi32>
    %80 = arith.minsi %79, %78 : vector<1x512xi32>
    %c32_i32 = arith.constant 32 : i32
    %81 = vector.broadcast %c32_i32 : i32 to vector<1x512xi32>
    %82 = arith.muli %72, %81 : vector<1x512xi32>
    %c2_i32 = arith.constant 2 : i32
    %83 = vector.broadcast %c2_i32 : i32 to vector<1x512xi32>
    %84 = arith.muli %76, %83 : vector<1x512xi32>
    %85 = arith.addi %82, %84 : vector<1x512xi32>
    %c3_i32 = arith.constant 3 : i32
    %86 = vector.broadcast %c3_i32 : i32 to vector<1x512xi32>
    %87 = arith.shrsi %80, %86 : vector<1x512xi32>
    %88 = arith.addi %85, %87 : vector<1x512xi32>
    %c7_i32 = arith.constant 7 : i32
    %89 = vector.broadcast %c7_i32 : i32 to vector<1x512xi32>
    %90 = arith.andi %80, %89 : vector<1x512xi32>
    %c7_i32_22 = arith.constant 7 : i32
    %91 = vector.broadcast %c7_i32_22 : i32 to vector<1x512xi32>
    %92 = arith.shrsi %88, %91 : vector<1x512xi32>
    %c127_i32 = arith.constant 127 : i32
    %93 = vector.broadcast %c127_i32 : i32 to vector<1x512xi32>
    %94 = arith.andi %88, %93 : vector<1x512xi32>
    %95 = tpu.iota {dimensions = array<i32: 0>} : vector<128x512xi32>
    %96 = vector.broadcast %94 : vector<1x512xi32> to vector<128x512xi32>
    %97 = arith.cmpi eq, %95, %96 : vector<128x512xi32>
    %98 = arith.extui %97 : vector<128x512xi1> to vector<128x512xi32>
    %99 = arith.sitofp %98 : vector<128x512xi32> to vector<128x512xf32>
    %100 = arith.truncf %99 : vector<128x512xf32> to vector<128x512xbf16>
    %c0_23 = arith.constant 0 : index
    %c0_24 = arith.constant 0 : index
    %101 = vector.load %arg3[%c0_23, %c0_24] : memref<16x128xbf16, #tpu.memory_space<vmem>>, vector<16x128xbf16>
    %cst_25 = arith.constant dense<0.000000e+00> : vector<16x512xf32>
    %102 = tpu.matmul %101, %100, %cst_25 {dimension_numbers = #tpu.dot_dimension_numbers<[1], [0], [0], [1], [0, 0, 1, 1], [], []>} : vector<16x128xbf16>, vector<128x512xbf16>, vector<16x512xf32> -> vector<16x512xf32>
    %103 = tpu.iota {dimensions = array<i32: 0>} : vector<16x512xi32>
    %104 = vector.broadcast %92 : vector<1x512xi32> to vector<16x512xi32>
    %105 = arith.cmpi eq, %103, %104 : vector<16x512xi32>
    %cst_26 = arith.constant 0.000000e+00 : f32
    %106 = vector.broadcast %cst_26 : f32 to vector<16x512xf32>
    %107 = arith.select %105, %102, %106 : vector<16x512xi1>, vector<16x512xf32>
    %cst_27 = arith.constant dense<0.000000e+00> : vector<512xf32>
    %108 = vector.multi_reduction <add>, %107, %cst_27 [0] : vector<16x512xf32> to vector<512xf32>
    %109 = vector.shape_cast %108 : vector<512xf32> to vector<1x512xf32>
    %110 = arith.fptosi %109 : vector<1x512xf32> to vector<1x512xi32>
    %c0_i32_28 = arith.constant 0 : i32
    %111 = vector.broadcast %c0_i32_28 : i32 to vector<1x512xi32>
    %c0_i32_29 = arith.constant 0 : i32
    %112 = vector.broadcast %c0_i32_29 : i32 to vector<1x512xi32>
    %113 = arith.cmpi eq, %90, %112 : vector<1x512xi32>
    %c0_i32_30 = arith.constant 0 : i32
    %114 = vector.broadcast %c0_i32_30 : i32 to vector<1x512xi32>
    %115 = arith.shrsi %110, %114 : vector<1x512xi32>
    %c1_i32 = arith.constant 1 : i32
    %116 = vector.broadcast %c1_i32 : i32 to vector<1x512xi32>
    %117 = arith.andi %115, %116 : vector<1x512xi32>
    %118 = arith.select %113, %117, %111 : vector<1x512xi1>, vector<1x512xi32>
    %c1_i32_31 = arith.constant 1 : i32
    %119 = vector.broadcast %c1_i32_31 : i32 to vector<1x512xi32>
    %120 = arith.cmpi eq, %90, %119 : vector<1x512xi32>
    %c1_i32_32 = arith.constant 1 : i32
    %121 = vector.broadcast %c1_i32_32 : i32 to vector<1x512xi32>
    %122 = arith.shrsi %110, %121 : vector<1x512xi32>
    %c1_i32_33 = arith.constant 1 : i32
    %123 = vector.broadcast %c1_i32_33 : i32 to vector<1x512xi32>
    %124 = arith.andi %122, %123 : vector<1x512xi32>
    %125 = arith.select %120, %124, %118 : vector<1x512xi1>, vector<1x512xi32>
    %c2_i32_34 = arith.constant 2 : i32
    %126 = vector.broadcast %c2_i32_34 : i32 to vector<1x512xi32>
    %127 = arith.cmpi eq, %90, %126 : vector<1x512xi32>
    %c2_i32_35 = arith.constant 2 : i32
    %128 = vector.broadcast %c2_i32_35 : i32 to vector<1x512xi32>
    %129 = arith.shrsi %110, %128 : vector<1x512xi32>
    %c1_i32_36 = arith.constant 1 : i32
    %130 = vector.broadcast %c1_i32_36 : i32 to vector<1x512xi32>
    %131 = arith.andi %129, %130 : vector<1x512xi32>
    %132 = arith.select %127, %131, %125 : vector<1x512xi1>, vector<1x512xi32>
    %c3_i32_37 = arith.constant 3 : i32
    %133 = vector.broadcast %c3_i32_37 : i32 to vector<1x512xi32>
    %134 = arith.cmpi eq, %90, %133 : vector<1x512xi32>
    %c3_i32_38 = arith.constant 3 : i32
    %135 = vector.broadcast %c3_i32_38 : i32 to vector<1x512xi32>
    %136 = arith.shrsi %110, %135 : vector<1x512xi32>
    %c1_i32_39 = arith.constant 1 : i32
    %137 = vector.broadcast %c1_i32_39 : i32 to vector<1x512xi32>
    %138 = arith.andi %136, %137 : vector<1x512xi32>
    %139 = arith.select %134, %138, %132 : vector<1x512xi1>, vector<1x512xi32>
    %c4_i32 = arith.constant 4 : i32
    %140 = vector.broadcast %c4_i32 : i32 to vector<1x512xi32>
    %141 = arith.cmpi eq, %90, %140 : vector<1x512xi32>
    %c4_i32_40 = arith.constant 4 : i32
    %142 = vector.broadcast %c4_i32_40 : i32 to vector<1x512xi32>
    %143 = arith.shrsi %110, %142 : vector<1x512xi32>
    %c1_i32_41 = arith.constant 1 : i32
    %144 = vector.broadcast %c1_i32_41 : i32 to vector<1x512xi32>
    %145 = arith.andi %143, %144 : vector<1x512xi32>
    %146 = arith.select %141, %145, %139 : vector<1x512xi1>, vector<1x512xi32>
    %c5_i32 = arith.constant 5 : i32
    %147 = vector.broadcast %c5_i32 : i32 to vector<1x512xi32>
    %148 = arith.cmpi eq, %90, %147 : vector<1x512xi32>
    %c5_i32_42 = arith.constant 5 : i32
    %149 = vector.broadcast %c5_i32_42 : i32 to vector<1x512xi32>
    %150 = arith.shrsi %110, %149 : vector<1x512xi32>
    %c1_i32_43 = arith.constant 1 : i32
    %151 = vector.broadcast %c1_i32_43 : i32 to vector<1x512xi32>
    %152 = arith.andi %150, %151 : vector<1x512xi32>
    %153 = arith.select %148, %152, %146 : vector<1x512xi1>, vector<1x512xi32>
    %c6_i32 = arith.constant 6 : i32
    %154 = vector.broadcast %c6_i32 : i32 to vector<1x512xi32>
    %155 = arith.cmpi eq, %90, %154 : vector<1x512xi32>
    %c6_i32_44 = arith.constant 6 : i32
    %156 = vector.broadcast %c6_i32_44 : i32 to vector<1x512xi32>
    %157 = arith.shrsi %110, %156 : vector<1x512xi32>
    %c1_i32_45 = arith.constant 1 : i32
    %158 = vector.broadcast %c1_i32_45 : i32 to vector<1x512xi32>
    %159 = arith.andi %157, %158 : vector<1x512xi32>
    %160 = arith.select %155, %159, %153 : vector<1x512xi1>, vector<1x512xi32>
    %c7_i32_46 = arith.constant 7 : i32
    %161 = vector.broadcast %c7_i32_46 : i32 to vector<1x512xi32>
    %162 = arith.cmpi eq, %90, %161 : vector<1x512xi32>
    %c7_i32_47 = arith.constant 7 : i32
    %163 = vector.broadcast %c7_i32_47 : i32 to vector<1x512xi32>
    %164 = arith.shrsi %110, %163 : vector<1x512xi32>
    %c1_i32_48 = arith.constant 1 : i32
    %165 = vector.broadcast %c1_i32_48 : i32 to vector<1x512xi32>
    %166 = arith.andi %164, %165 : vector<1x512xi32>
    %167 = arith.select %162, %166, %160 : vector<1x512xi1>, vector<1x512xi32>
    %c1_i32_49 = arith.constant 1 : i32
    %168 = vector.broadcast %c1_i32_49 : i32 to vector<1x512xi32>
    %169 = arith.cmpi eq, %167, %168 : vector<1x512xi32>
    %170 = arith.andi %68, %169 : vector<1x512xi1>
    %171 = arith.extui %170 : vector<1x512xi1> to vector<1x512xi8>
    %c0_50 = arith.constant 0 : index
    %c0_51 = arith.constant 0 : index
    %172 = vector.load %arg5[%c0_50, %c0_51] : memref<1x512xi8, #tpu.memory_space<vmem>>, vector<1x512xi8>
    tpu.vector_store %arg5[%c0_50, %c0_51], %171 {strides = array<i32>} : memref<1x512xi8, #tpu.memory_space<vmem>>, vector<1x512xi8>,
    return
  }
  func.func @transform_0(%arg0: i32) -> i32 {
    %c0_i32 = arith.constant 0 : i32
    %c0_i32_0 = arith.constant 0 : i32
    return %c0_i32 : i32
  }
  func.func @transform_1(%arg0: i32) -> i32 {
    %c0_i32 = arith.constant 0 : i32
    %c0_i32_0 = arith.constant 0 : i32
    return %c0_i32 : i32
  }
  func.func @transform_2(%arg0: i32) -> (i32, i32) {
    %c0_i32 = arith.constant 0 : i32
    %c0_i32_0 = arith.constant 0 : i32
    %c0_i32_1 = arith.constant 0 : i32
    return %c0_i32, %c0_i32_0 : i32, i32
  }
  func.func @transform_3(%arg0: i32) -> (i32, i32) {
    %c0_i32 = arith.constant 0 : i32
    %c0_i32_0 = arith.constant 0 : i32
    return %c0_i32, %arg0 : i32, i32
  }
  func.func @transform_4(%arg0: i32) -> (i32, i32) {
    %c0_i32 = arith.constant 0 : i32
    %c0_i32_0 = arith.constant 0 : i32
    return %c0_i32, %arg0 : i32, i32
  }
}

</mosaic_0001>

<llo_original>
// kernel: _lookup_packed.1
$region0: #{_lookup_packed.1}
  #allocation0 [shape = 'u32[]', space=smem, size = 0x4, offset = 0x4, fixed_abs, tag = 'smem constant byte address 0x4 - core index']
  #allocation1 [shape = 'u32[144,128]{1,0:T(1,128)}', space=vmem, size = 0x12000, scoped, tag = 'internal scratch']
  %s0 = inlined_call_operand.vmem [shape: f32[3], index: 0, kind: input, shape index: {}]
  %s1 = inlined_call_operand.vmem [shape: f32[3], index: 1, kind: input, shape index: {}]
  %s2 = inlined_call_operand.vmem [shape: bf16[16,128], index: 2, kind: input, shape index: {}]
  %s3 = inlined_call_operand.vmem [shape: f32[3,512], index: 3, kind: input, shape index: {}]
  %s4 = inlined_call_operand.vmem [shape: s8[1,512], index: 4, kind: output, shape index: {}]
  %s5 = sld [smem:[#allocation0]]
  $region34: #{_lookup_packed.1} parent=0
    _
  %s7 = ssub.s32 1, %s5
  %s8 = scalar_select 0, %s7, %s5
  $region1: #{_lookup_packed.1} parent=0
    #allocation2 [shape = 'u8[512]{0}', space=smem, size = 0x200, scoped, tag = 'input window, operand 0, single buffered']
    #allocation3 [shape = 's32[1]{0}', space=sflag, size = 0x4, scoped, tag = 'scoped memory for _lookup_packed.1']
    #allocation4 [shape = 'u8[512]{0}', space=smem, size = 0x200, scoped, tag = 'input window, operand 1, single buffered']
    #allocation5 [shape = 's32[1]{0}', space=sflag, size = 0x4, scoped, tag = 'scoped memory for _lookup_packed.1']
    %9 = vsyncpa [#allocation3], 0
    %10 = vsyncpa [#allocation5], 0
    // Predicated region
    $region2: #{_lookup_packed.1} parent=1 // pred_check
      _
    $region3: #{_lookup_packed.1} parent=1 // pred_check_branch
      %12 = sbr.rel (0) target = $region5
    $region4: #{_lookup_packed.1} parent=1 // pred_region
      %s14 = ssub.s32 16, 16
      %15 = vsyncadd [#allocation3], %s14
      %s17 = sshll.u32 %s0, 4
      %s18 = int_to_ptr.vmem [resolvable:$true] %s17
      %20 = dma.vmem_to_smem %s18, 16, [#allocation2], [#allocation3]
    $region5: #{_lookup_packed.1} parent=1 // pred_fallthru
      _
    // Predicated region
    $region6: #{_lookup_packed.1} parent=1 // pred_check
      _
    $region7: #{_lookup_packed.1} parent=1 // pred_check_branch
      %22 = sbr.rel (0) target = $region9
    $region8: #{_lookup_packed.1} parent=1 // pred_region
      %s24 = ssub.s32 16, 16
      %25 = vsyncadd [#allocation5], %s24
      %s27 = sshll.u32 %s1, 4
      %s28 = int_to_ptr.vmem [resolvable:$true] %s27
      %30 = dma.vmem_to_smem %s28, 16, [#allocation4], [#allocation5]
    $region9: #{_lookup_packed.1} parent=1 // pred_fallthru
      _
    // Predicated region
    $region10: #{_lookup_packed.1} parent=1 // pred_check
      _
    $region11: #{_lookup_packed.1} parent=1 // pred_check_branch
      %32 = sbr.rel (0) target = $region13
    $region12: #{_lookup_packed.1} parent=1 // pred_region
      _
    $region13: #{_lookup_packed.1} parent=1 // pred_fallthru
      _
    // Predicated region
    $region14: #{_lookup_packed.1} parent=1 // pred_check
      _
    $region15: #{_lookup_packed.1} parent=1 // pred_check_branch
      %34 = sbr.rel (0) target = $region17
    $region16: #{_lookup_packed.1} parent=1 // pred_region
      _
    $region17: #{_lookup_packed.1} parent=1 // pred_fallthru
      _
    // Predicated region
    $region18: #{_lookup_packed.1} parent=1 // pred_check
      _
    $region19: #{_lookup_packed.1} parent=1 // pred_check_branch
      %36 = sbr.rel (0) target = $region21
    $region20: #{_lookup_packed.1} parent=1 // pred_region
      %37 = dma.done [#allocation3], 16
    $region21: #{_lookup_packed.1} parent=1 // pred_fallthru
      _
    // Predicated region
    $region22: #{_lookup_packed.1} parent=1 // pred_check
      _
    $region23: #{_lookup_packed.1} parent=1 // pred_check_branch
      %39 = sbr.rel (0) target = $region25
    $region24: #{_lookup_packed.1} parent=1 // pred_region
      %40 = dma.done [#allocation5], 16
    $region25: #{_lookup_packed.1} parent=1 // pred_fallthru
      _
    %41 = sfence
    %v45 = vld [vmem:[%s3] sm:$0x77]
    %v46 = vld [vmem:[%s3 + $0x8] sm:$0x77]
    %s47 = sld [smem:[#allocation2]]
    %v48 = vstv %s47
    %v49 = vmul.f32 %v45, %v48
    %v50 = vmul.f32 %v46, %v48
    %s51 = sld [smem:[#allocation4]]
    %v52 = vstv %s51
    %v53 = vadd.f32 %v49, %v52
    %v54 = vadd.f32 %v50, %v52
    %s55 = sld [smem:[#allocation2 + $0x1]]
    %v56 = vstv %s55
    %v57 = vmul.f32 %v45, %v56
    %v58 = vmul.f32 %v46, %v56
    %s59 = sld [smem:[#allocation4 + $0x1]]
    %v60 = vstv %s59
    %v61 = vadd.f32 %v57, %v60
    %v62 = vadd.f32 %v58, %v60
    %s63 = sld [smem:[#allocation2 + $0x2]]
    %v64 = vstv %s63
    %v65 = vmul.f32 %v45, %v64
    %v66 = vmul.f32 %v46, %v64
    %s67 = sld [smem:[#allocation4 + $0x2]]
    %v68 = vstv %s67
    %v69 = vadd.f32 %v65, %v68
    %v70 = vadd.f32 %v66, %v68
    %vm71 = vcmp.ge.f32.partialorder %v53, 0.0
    %vm72 = vcmp.ge.f32.partialorder %v54, 0.0
    %v73 = vadd.f32 %v53, 0.5
    %v74 = vadd.f32 %v54, 0.5
    %v75 = vfloor.f32 %v73
    %v76 = vfloor.f32 %v74
    %v77 = vsub.f32 %v53, 0.5
    %v78 = vsub.f32 %v54, 0.5
    %v79 = vceil.f32 %v77
    %v80 = vceil.f32 %v78
    %v81 = vsel %vm71, %v75, %v79
    %v82 = vsel %vm72, %v76, %v80
    %v83 = vcvt.f32.s32.to.zero.pseudo %v81
    %v84 = vcvt.f32.s32.to.zero.pseudo %v82
    %vm85 = vcmp.ge.f32.partialorder %v61, 0.0
    %vm86 = vcmp.ge.f32.partialorder %v62, 0.0
    %v87 = vadd.f32 %v61, 0.5
    %v88 = vadd.f32 %v62, 0.5
    %v89 = vfloor.f32 %v87
    %v90 = vfloor.f32 %v88
    %v91 = vsub.f32 %v61, 0.5
    %v92 = vsub.f32 %v62, 0.5
    %v93 = vceil.f32 %v91
    %v94 = vceil.f32 %v92
    %v95 = vsel %vm85, %v89, %v93
    %v96 = vsel %vm86, %v90, %v94
    %v97 = vcvt.f32.s32.to.zero.pseudo %v95
    %v98 = vcvt.f32.s32.to.zero.pseudo %v96
    %vm99 = vcmp.ge.f32.partialorder %v69, 0.0
    %vm100 = vcmp.ge.f32.partialorder %v70, 0.0
    %v101 = vadd.f32 %v69, 0.5
    %v102 = vadd.f32 %v70, 0.5
    %v103 = vfloor.f32 %v101
    %v104 = vfloor.f32 %v102
    %v105 = vsub.f32 %v69, 0.5
    %v106 = vsub.f32 %v70, 0.5
    %v107 = vceil.f32 %v105
    %v108 = vceil.f32 %v106
    %v109 = vsel %vm99, %v103, %v107
    %v110 = vsel %vm100, %v104, %v108
    %v111 = vcvt.f32.s32.to.zero.pseudo %v109
    %v112 = vcvt.f32.s32.to.zero.pseudo %v110
    %vm113 = vcmp.ge.s32.totalorder %v83, 0
    %vm114 = vcmp.ge.s32.totalorder %v84, 0
    %vm115 = vcmp.lt.s32.totalorder %v83, 16
    %vm116 = vcmp.lt.s32.totalorder %v84, 16
    %vm117 = vmand %vm113, %vm115
    %vm118 = vmand %vm114, %vm116
    %vm119 = vcmp.ge.s32.totalorder %v97, 0
    %vm120 = vcmp.ge.s32.totalorder %v98, 0
    %v121 = vsel %vm119, 1, 0
    %v122 = vsel %vm120, 1, 0
    %v123 = vrot.slane %v121, 5
    %v124 = vrot.slane %v123, 4
    %v125 = vrot.slane %v122, 5
    %v126 = vrot.slane %v125, 4
    %vm127 = vcmp.ne.s32.totalorder %v124, 0
    %vm128 = vcmp.ne.s32.totalorder %v126, 0
    %vm129 = vmand %vm117, %vm127
    %vm130 = vmand %vm118, %vm128
    %vm131 = vcmp.lt.s32.totalorder %v97, 16
    %vm132 = vcmp.lt.s32.totalorder %v98, 16
    %v133 = vsel %vm131, 1, 0
    %v134 = vsel %vm132, 1, 0
    %v135 = vrot.slane %v133, 5
    %v136 = vrot.slane %v135, 4
    %v137 = vrot.slane %v134, 5
    %v138 = vrot.slane %v137, 4
    %vm139 = vcmp.ne.s32.totalorder %v136, 0
    %vm140 = vcmp.ne.s32.totalorder %v138, 0
    %vm141 = vmand %vm129, %vm139
    %vm142 = vmand %vm130, %vm140
    %vm143 = vcmp.ge.s32.totalorder %v111, 0
    %vm144 = vcmp.ge.s32.totalorder %v112, 0
    %v145 = vsel %vm143, 1, 0
    %v146 = vsel %vm144, 1, 0
    %v147 = vrot.slane %v145, 6
    %v148 = vrot.slane %v147, 4
    %v149 = vrot.slane %v146, 6
    %v150 = vrot.slane %v149, 4
    %vm151 = vcmp.ne.s32.totalorder %v148, 0
    %vm152 = vcmp.ne.s32.totalorder %v150, 0
    %vm153 = vmand %vm141, %vm151
    %vm154 = vmand %vm142, %vm152
    %vm155 = vcmp.lt.s32.totalorder %v111, 16
    %vm156 = vcmp.lt.s32.totalorder %v112, 16
    %v157 = vsel %vm155, 1, 0
    %v158 = vsel %vm156, 1, 0
    %v159 = vrot.slane %v157, 6
    %v160 = vrot.slane %v159, 4
    %v161 = vrot.slane %v158, 6
    %v162 = vrot.slane %v161, 4
    %vm163 = vcmp.ne.s32.totalorder %v160, 0
    %vm164 = vcmp.ne.s32.totalorder %v162, 0
    %vm165 = vmand %vm153, %vm163
    %vm166 = vmand %vm154, %vm164
    %vm167 = vcmp.gt.s32.totalorder %v83, 0
    %v168 = vsel %vm167, %v83, 0
    %vm169 = vcmp.gt.s32.totalorder %v84, 0
    %v170 = vsel %vm169, %v84, 0
    %vm171 = vcmp.lt.s32.totalorder %v168, 15
    %v172 = vsel %vm171, %v168, 15
    %vm173 = vcmp.lt.s32.totalorder %v170, 15
    %v174 = vsel %vm173, %v170, 15
    %vm175 = vcmp.gt.s32.totalorder %v97, 0
    %v176 = vsel %vm175, %v97, 0
    %vm177 = vcmp.gt.s32.totalorder %v98, 0
    %v178 = vsel %vm177, %v98, 0
    %vm179 = vcmp.lt.s32.totalorder %v176, 15
    %v180 = vsel %vm179, %v176, 15
    %vm181 = vcmp.lt.s32.totalorder %v178, 15
    %v182 = vsel %vm181, %v178, 15
    %vm183 = vcmp.gt.s32.totalorder %v111, 0
    %v184 = vsel %vm183, %v111, 0
    %vm185 = vcmp.gt.s32.totalorder %v112, 0
    %v186 = vsel %vm185, %v112, 0
    %vm187 = vcmp.lt.s32.totalorder %v184, 15
    %v188 = vsel %vm187, %v184, 15
    %vm189 = vcmp.lt.s32.totalorder %v186, 15
    %v190 = vsel %vm189, %v186, 15
    %v191 = vmul.u32 %v172, 32
    %v192 = vmul.u32 %v174, 32
    %v193 = vmul.u32 %v180, 2
    %v194 = vmul.u32 %v182, 2
    %v195 = vrot.slane %v193, 5
    %v196 = vrot.slane %v195, 4
    %v197 = vrot.slane %v194, 5
    %v198 = vrot.slane %v197, 4
    %v199 = vadd.s32 %v191, %v196
    %v200 = vadd.s32 %v192, %v198
    %v201 = vshra.s32 %v188, 3
    %v202 = vshra.s32 %v190, 3
    %v203 = vrot.slane %v201, 6
    %v204 = vrot.slane %v203, 4
    %v205 = vrot.slane %v202, 6
    %v206 = vrot.slane %v205, 4
    %v207 = vadd.s32 %v199, %v204
    %v208 = vadd.s32 %v200, %v206
    %v209 = vand.u32 %v188, 7
    %v210 = vand.u32 %v190, 7
    %v211 = vshra.s32 %v207, 7
    %v212 = vshra.s32 %v208, 7
    %v213 = vand.u32 %v207, 127
    %v214 = vand.u32 %v208, 127
    %v215 = vlaneseq
    %v216 = vshrl.u32 %v215, 7
    %v217 = vadd.s32 %v216, 8
    %v218 = vadd.s32 %v216, 16
    %v219 = vadd.s32 %v216, 24
    %v220 = vadd.s32 %v216, 32
    %v221 = vadd.s32 %v216, 40
    %v222 = vadd.s32 %v216, 48
    %v223 = vadd.s32 %v216, 56
    %v224 = vadd.s32 %v216, 64
    %v225 = vadd.s32 %v216, 72
    %v226 = vadd.s32 %v216, 80
    %v227 = vadd.s32 %v216, 88
    %v228 = vadd.s32 %v216, 96
    %v229 = vadd.s32 %v216, 104
    %v230 = vadd.s32 %v216, 112
    %v231 = vadd.s32 %v216, 120
    %v232 = vlaneseq
    %v233 = vshrl.u32 %v232, 7
    %v234 = vsub.s32 0, %v233
    %v235 = vrot.slane %v213, %v234
    %v236 = vlaneseq
    %v237 = vshrl.u32 %v236, 7
    %v238 = vsub.s32 4, %v237
    %v239 = vrot.slane %v213, %v238
    %v240 = vlaneseq
    %v241 = vshrl.u32 %v240, 7
    %v242 = vsub.s32 0, %v241
    %v243 = vrot.slane %v214, %v242
    %v244 = vlaneseq
    %v245 = vshrl.u32 %v244, 7
    %v246 = vsub.s32 4, %v245
    %v247 = vrot.slane %v214, %v246
    %v248 = vlaneseq
    %v249 = vshrl.u32 %v248, 7
    %v250 = vsub.s32 0, %v249
    %v251 = vrot.slane %v235, %v250
    %v252 = vlaneseq
    %v253 = vshrl.u32 %v252, 7
    %v254 = vsub.s32 0, %v253
    %v255 = vrot.slane %v239, %v254
    %v256 = vlaneseq
    %v257 = vshrl.u32 %v256, 7
    %v258 = vsub.s32 0, %v257
    %v259 = vrot.slane %v243, %v258
    %v260 = vlaneseq
    %v261 = vshrl.u32 %v260, 7
    %v262 = vsub.s32 0, %v261
    %v263 = vrot.slane %v247, %v262
    %vm264 = vcmp.eq.s32.totalorder %v216, %v251
    %vm265 = vcmp.eq.s32.totalorder %v216, %v255
    %vm266 = vcmp.eq.s32.totalorder %v216, %v259
    %vm267 = vcmp.eq.s32.totalorder %v216, %v263
    %vm268 = vcmp.eq.s32.totalorder %v217, %v251
    %vm269 = vcmp.eq.s32.totalorder %v217, %v255
    %vm270 = vcmp.eq.s32.totalorder %v217, %v259
    %vm271 = vcmp.eq.s32.totalorder %v217, %v263
    %vm272 = vcmp.eq.s32.totalorder %v218, %v251
    %vm273 = vcmp.eq.s32.totalorder %v218, %v255
    %vm274 = vcmp.eq.s32.totalorder %v218, %v259
    %vm275 = vcmp.eq.s32.totalorder %v218, %v263
    %vm276 = vcmp.eq.s32.totalorder %v219, %v251
    %vm277 = vcmp.eq.s32.totalorder %v219, %v255
    %vm278 = vcmp.eq.s32.totalorder %v219, %v259
    %vm279 = vcmp.eq.s32.totalorder %v219, %v263
    %vm280 = vcmp.eq.s32.totalorder %v220, %v251
    %vm281 = vcmp.eq.s32.totalorder %v220, %v255
    %vm282 = vcmp.eq.s32.totalorder %v220, %v259
    %vm283 = vcmp.eq.s32.totalorder %v220, %v263
    %vm284 = vcmp.eq.s32.totalorder %v221, %v251
    %vm285 = vcmp.eq.s32.totalorder %v221, %v255
    %vm286 = vcmp.eq.s32.totalorder %v221, %v259
    %vm287 = vcmp.eq.s32.totalorder %v221, %v263
    %vm288 = vcmp.eq.s32.totalorder %v222, %v251
    %vm289 = vcmp.eq.s32.totalorder %v222, %v255
    %vm290 = vcmp.eq.s32.totalorder %v222, %v259
    %vm291 = vcmp.eq.s32.totalorder %v222, %v263
    %vm292 = vcmp.eq.s32.totalorder %v223, %v251
    %vm293 = vcmp.eq.s32.totalorder %v223, %v255
    %vm294 = vcmp.eq.s32.totalorder %v223, %v259
    %vm295 = vcmp.eq.s32.totalorder %v223, %v263
    %vm296 = vcmp.eq.s32.totalorder %v224, %v251
    %vm297 = vcmp.eq.s32.totalorder %v224, %v255
    %vm298 = vcmp.eq.s32.totalorder %v224, %v259
    %vm299 = vcmp.eq.s32.totalorder %v224, %v263
    %vm300 = vcmp.eq.s32.totalorder %v225, %v251
    %vm301 = vcmp.eq.s32.totalorder %v225, %v255
    %vm302 = vcmp.eq.s32.totalorder %v225, %v259
    %vm303 = vcmp.eq.s32.totalorder %v225, %v263
    %vm304 = vcmp.eq.s32.totalorder %v226, %v251
    %vm305 = vcmp.eq.s32.totalorder %v226, %v255
    %vm306 = vcmp.eq.s32.totalorder %v226, %v259
    %vm307 = vcmp.eq.s32.totalorder %v226, %v263
    %vm308 = vcmp.eq.s32.totalorder %v227, %v251
    %vm309 = vcmp.eq.s32.totalorder %v227, %v255
    %vm310 = vcmp.eq.s32.totalorder %v227, %v259
    %vm311 = vcmp.eq.s32.totalorder %v227, %v263
    %vm312 = vcmp.eq.s32.totalorder %v228, %v251
    %vm313 = vcmp.eq.s32.totalorder %v228, %v255
    %vm314 = vcmp.eq.s32.totalorder %v228, %v259
    %vm315 = vcmp.eq.s32.totalorder %v228, %v263
    %vm316 = vcmp.eq.s32.totalorder %v229, %v251
    %vm317 = vcmp.eq.s32.totalorder %v229, %v255
    %vm318 = vcmp.eq.s32.totalorder %v229, %v259
    %vm319 = vcmp.eq.s32.totalorder %v229, %v263
    %vm320 = vcmp.eq.s32.totalorder %v230, %v251
    %vm321 = vcmp.eq.s32.totalorder %v230, %v255
    %vm322 = vcmp.eq.s32.totalorder %v230, %v259
    %vm323 = vcmp.eq.s32.totalorder %v230, %v263
    %vm324 = vcmp.eq.s32.totalorder %v231, %v251
    %vm325 = vcmp.eq.s32.totalorder %v231, %v255
    %vm326 = vcmp.eq.s32.totalorder %v231, %v259
    %vm327 = vcmp.eq.s32.totalorder %v231, %v263
    %v328 = vsel %vm264, 1, 0
    %v329 = vsel %vm265, 1, 0
    %v330 = vsel %vm266, 1, 0
    %v331 = vsel %vm267, 1, 0
    %v332 = vsel %vm268, 1, 0
    %v333 = vsel %vm269, 1, 0
    %v334 = vsel %vm270, 1, 0
    %v335 = vsel %vm271, 1, 0
    %v336 = vsel %vm272, 1, 0
    %v337 = vsel %vm273, 1, 0
    %v338 = vsel %vm274, 1, 0
    %v339 = vsel %vm275, 1, 0
    %v340 = vsel %vm276, 1, 0
    %v341 = vsel %vm277, 1, 0
    %v342 = vsel %vm278, 1, 0
    %v343 = vsel %vm279, 1, 0
    %v344 = vsel %vm280, 1, 0
    %v345 = vsel %vm281, 1, 0
    %v346 = vsel %vm282, 1, 0
    %v347 = vsel %vm283, 1, 0
    %v348 = vsel %vm284, 1, 0
    %v349 = vsel %vm285, 1, 0
    %v350 = vsel %vm286, 1, 0
    %v351 = vsel %vm287, 1, 0
    %v352 = vsel %vm288, 1, 0
    %v353 = vsel %vm289, 1, 0
    %v354 = vsel %vm290, 1, 0
    %v355 = vsel %vm291, 1, 0
    %v356 = vsel %vm292, 1, 0
    %v357 = vsel %vm293, 1, 0
    %v358 = vsel %vm294, 1, 0
    %v359 = vsel %vm295, 1, 0
    %v360 = vsel %vm296, 1, 0
    %v361 = vsel %vm297, 1, 0
    %v362 = vsel %vm298, 1, 0
    %v363 = vsel %vm299, 1, 0
    %v364 = vsel %vm300, 1, 0
    %v365 = vsel %vm301, 1, 0
    %v366 = vsel %vm302, 1, 0
    %v367 = vsel %vm303, 1, 0
    %v368 = vsel %vm304, 1, 0
    %v369 = vsel %vm305, 1, 0
    %v370 = vsel %vm306, 1, 0
    %v371 = vsel %vm307, 1, 0
    %v372 = vsel %vm308, 1, 0
    %v373 = vsel %vm309, 1, 0
    %v374 = vsel %vm310, 1, 0
    %v375 = vsel %vm311, 1, 0
    %v376 = vsel %vm312, 1, 0
    %v377 = vsel %vm313, 1, 0
    %v378 = vsel %vm314, 1, 0
    %v379 = vsel %vm315, 1, 0
    %v380 = vsel %vm316, 1, 0
    %v381 = vsel %vm317, 1, 0
    %v382 = vsel %vm318, 1, 0
    %v383 = vsel %vm319, 1, 0
    %v384 = vsel %vm320, 1, 0
    %v385 = vsel %vm321, 1, 0
    %v386 = vsel %vm322, 1, 0
    %v387 = vsel %vm323, 1, 0
    %v388 = vsel %vm324, 1, 0
    %v389 = vsel %vm325, 1, 0
    %v390 = vsel %vm326, 1, 0
    %v391 = vsel %vm327, 1, 0
    %v392 = vcvt.s32.f32 %v328
    %v393 = vcvt.s32.f32 %v329
    %v394 = vcvt.s32.f32 %v330
    %v395 = vcvt.s32.f32 %v331
    %v396 = vcvt.s32.f32 %v332
    %v397 = vcvt.s32.f32 %v333
    %v398 = vcvt.s32.f32 %v334
    %v399 = vcvt.s32.f32 %v335
    %v400 = vcvt.s32.f32 %v336
    %v401 = vcvt.s32.f32 %v337
    %v402 = vcvt.s32.f32 %v338
    %v403 = vcvt.s32.f32 %v339
    %v404 = vcvt.s32.f32 %v340
    %v405 = vcvt.s32.f32 %v341
    %v406 = vcvt.s32.f32 %v342
    %v407 = vcvt.s32.f32 %v343
    %v408 = vcvt.s32.f32 %v344
    %v409 = vcvt.s32.f32 %v345
    %v410 = vcvt.s32.f32 %v346
    %v411 = vcvt.s32.f32 %v347
    %v412 = vcvt.s32.f32 %v348
    %v413 = vcvt.s32.f32 %v349
    %v414 = vcvt.s32.f32 %v350
    %v415 = vcvt.s32.f32 %v351
    %v416 = vcvt.s32.f32 %v352
    %v417 = vcvt.s32.f32 %v353
    %v418 = vcvt.s32.f32 %v354
    %v419 = vcvt.s32.f32 %v355
    %v420 = vcvt.s32.f32 %v356
    %v421 = vcvt.s32.f32 %v357
    %v422 = vcvt.s32.f32 %v358
    %v423 = vcvt.s32.f32 %v359
    %v424 = vcvt.s32.f32 %v360
    %v425 = vcvt.s32.f32 %v361
    %v426 = vcvt.s32.f32 %v362
    %v427 = vcvt.s32.f32 %v363
    %v428 = vcvt.s32.f32 %v364
    %v429 = vcvt.s32.f32 %v365
    %v430 = vcvt.s32.f32 %v366
    %v431 = vcvt.s32.f32 %v367
    %v432 = vcvt.s32.f32 %v368
    %v433 = vcvt.s32.f32 %v369
    %v434 = vcvt.s32.f32 %v370
    %v435 = vcvt.s32.f32 %v371
    %v436 = vcvt.s32.f32 %v372
    %v437 = vcvt.s32.f32 %v373
    %v438 = vcvt.s32.f32 %v374
    %v439 = vcvt.s32.f32 %v375
    %v440 = vcvt.s32.f32 %v376
    %v441 = vcvt.s32.f32 %v377
    %v442 = vcvt.s32.f32 %v378
    %v443 = vcvt.s32.f32 %v379
    %v444 = vcvt.s32.f32 %v380
    %v445 = vcvt.s32.f32 %v381
    %v446 = vcvt.s32.f32 %v382
    %v447 = vcvt.s32.f32 %v383
    %v448 = vcvt.s32.f32 %v384
    %v449 = vcvt.s32.f32 %v385
    %v450 = vcvt.s32.f32 %v386
    %v451 = vcvt.s32.f32 %v387
    %v452 = vcvt.s32.f32 %v388
    %v453 = vcvt.s32.f32 %v389
    %v454 = vcvt.s32.f32 %v390
    %v455 = vcvt.s32.f32 %v391
    %v456 = vpack.c.bf16 %v396, %v392
    %v457 = vpack.c.bf16 %v397, %v393
    %v458 = vpack.c.bf16 %v398, %v394
    %v459 = vpack.c.bf16 %v399, %v395
    %v460 = vpack.c.bf16 %v404, %v400
    %v461 = vpack.c.bf16 %v405, %v401
    %v462 = vpack.c.bf16 %v406, %v402
    %v463 = vpack.c.bf16 %v407, %v403
    %v464 = vpack.c.bf16 %v412, %v408
    %v465 = vpack.c.bf16 %v413, %v409
    %v466 = vpack.c.bf16 %v414, %v410
    %v467 = vpack.c.bf16 %v415, %v411
    %v468 = vpack.c.bf16 %v420, %v416
    %v469 = vpack.c.bf16 %v421, %v417
    %v470 = vpack.c.bf16 %v422, %v418
    %v471 = vpack.c.bf16 %v423, %v419
    %v472 = vpack.c.bf16 %v428, %v424
    %v473 = vpack.c.bf16 %v429, %v425
    %v474 = vpack.c.bf16 %v430, %v426
    %v475 = vpack.c.bf16 %v431, %v427
    %v476 = vpack.c.bf16 %v436, %v432
    %v477 = vpack.c.bf16 %v437, %v433
    %v478 = vpack.c.bf16 %v438, %v434
    %v479 = vpack.c.bf16 %v439, %v435
    %v480 = vpack.c.bf16 %v444, %v440
    %v481 = vpack.c.bf16 %v445, %v441
    %v482 = vpack.c.bf16 %v446, %v442
    %v483 = vpack.c.bf16 %v447, %v443
    %v484 = vpack.c.bf16 %v452, %v448
    %v485 = vpack.c.bf16 %v453, %v449
    %v486 = vpack.c.bf16 %v454, %v450
    %v487 = vpack.c.bf16 %v455, %v451
    %v488 = vld [vmem:[%s2] sm:$0xf]
    %v489 = vld [vmem:[%s2 + $0x4] sm:$0xf]
    %v492 = vunpack.c.l.b16 %v488
    %v493 = vunpack.c.l.b16 %v489
    %v494 = vpack.c.b16 %v493, %v492
    %496 = vmatprep.subr.bf16.mxu0 %v457
    %497 = vmatpush1.bf16.msra.mxu0 %v456
    %498 = vmatprep.subr.bf16.mxu0 %v461
    %499 = vmatpush1.bf16.msra.mxu0 %v460
    %500 = vmatprep.subr.bf16.mxu0 %v465
    %501 = vmatpush1.bf16.msra.mxu0 %v464
    %502 = vmatprep.subr.bf16.mxu0 %v469
    %503 = vmatpush1.bf16.msra.mxu0 %v468
    %504 = vmatprep.subr.bf16.mxu0 %v473
    %505 = vmatpush1.bf16.msra.mxu0 %v472
    %506 = vmatprep.subr.bf16.mxu0 %v477
    %507 = vmatpush1.bf16.msra.mxu0 %v476
    %508 = vmatprep.subr.bf16.mxu0 %v481
    %509 = vmatpush1.bf16.msra.mxu0 %v480
    %510 = vmatprep.subr.bf16.mxu0 %v485
    %511 = vmatpush1.bf16.msra.mxu0 %v484
    %512 = vmatprep.subr.bf16.mxu0 0
    %513 = vmatpush1.bf16.msra.mxu0 0
    %514 = vmatprep.subr.bf16.mxu0 0
    %515 = vmatpush1.bf16.msra.mxu0 0
    %516 = vmatprep.subr.bf16.mxu0 0
    %517 = vmatpush1.bf16.msra.mxu0 0
    %518 = vmatprep.subr.bf16.mxu0 0
    %519 = vmatpush1.bf16.msra.mxu0 0
    %520 = vmatprep.subr.bf16.mxu0 0
    %521 = vmatpush1.bf16.msra.mxu0 0
    %522 = vmatprep.subr.bf16.mxu0 0
    %523 = vmatpush1.bf16.msra.mxu0 0
    %524 = vmatprep.subr.bf16.mxu0 0
    %525 = vmatpush1.bf16.msra.mxu0 0
    %526 = vmatprep.subr.bf16.mxu0 0
    %527 = vmatpush1.bf16.msra.mxu0 0
    %528 = vmatprep.mubr.bf16.mxu0 0
    %529 = vmatmul.mubr.bf16.gmra.mrb[0].mxu0 %v494
    %v530 = vpop.f32.mrb[0].mxu0
    %v531 = vadd.f32 0.0, %v530
    %v532 = vpop.f32.mrb[0].mxu0
    %v533 = vadd.f32 0.0, %v532
    %v534 = vpop.f32.mrb[0].mxu0
    %v535 = vadd.f32 0.0, %v534
    %v536 = vpop.f32.mrb[0].mxu0
    %v537 = vadd.f32 0.0, %v536
    %538 = vdwg.mxu0
    %539 = vmatprep.subr.bf16.mxu0 %v459
    %540 = vmatpush1.bf16.msra.mxu0 %v458
    %541 = vmatprep.subr.bf16.mxu0 %v463
    %542 = vmatpush1.bf16.msra.mxu0 %v462
    %543 = vmatprep.subr.bf16.mxu0 %v467
    %544 = vmatpush1.bf16.msra.mxu0 %v466
    %545 = vmatprep.subr.bf16.mxu0 %v471
    %546 = vmatpush1.bf16.msra.mxu0 %v470
    %547 = vmatprep.subr.bf16.mxu0 %v475
    %548 = vmatpush1.bf16.msra.mxu0 %v474
    %549 = vmatprep.subr.bf16.mxu0 %v479
    %550 = vmatpush1.bf16.msra.mxu0 %v478
    %551 = vmatprep.subr.bf16.mxu0 %v483
    %552 = vmatpush1.bf16.msra.mxu0 %v482
    %553 = vmatprep.subr.bf16.mxu0 %v487
    %554 = vmatpush1.bf16.msra.mxu0 %v486
    %555 = vmatprep.subr.bf16.mxu0 0
    %556 = vmatpush1.bf16.msra.mxu0 0
    %557 = vmatprep.subr.bf16.mxu0 0
    %558 = vmatpush1.bf16.msra.mxu0 0
    %559 = vmatprep.subr.bf16.mxu0 0
    %560 = vmatpush1.bf16.msra.mxu0 0
    %561 = vmatprep.subr.bf16.mxu0 0
    %562 = vmatpush1.bf16.msra.mxu0 0
    %563 = vmatprep.subr.bf16.mxu0 0
    %564 = vmatpush1.bf16.msra.mxu0 0
    %565 = vmatprep.subr.bf16.mxu0 0
    %566 = vmatpush1.bf16.msra.mxu0 0
    %567 = vmatprep.subr.bf16.mxu0 0
    %568 = vmatpush1.bf16.msra.mxu0 0
    %569 = vmatprep.subr.bf16.mxu0 0
    %570 = vmatpush1.bf16.msra.mxu0 0
    %571 = vmatprep.mubr.bf16.mxu0 0
    %572 = vmatmul.mubr.bf16.gmra.mrb[0].mxu0 %v494
    %v573 = vpop.f32.mrb[0].mxu0
    %v574 = vadd.f32 0.0, %v573
    %v575 = vpop.f32.mrb[0].mxu0
    %v576 = vadd.f32 0.0, %v575
    %v577 = vpop.f32.mrb[0].mxu0
    %v578 = vadd.f32 0.0, %v577
    %v579 = vpop.f32.mrb[0].mxu0
    %v580 = vadd.f32 0.0, %v579
    %581 = vdwg.mxu0
    %v582 = vlaneseq
    %v583 = vshrl.u32 %v582, 7
    %v584 = vsub.s32 0, %v583
    %v585 = vrot.slane %v211, %v584
    %v586 = vlaneseq
    %v587 = vshrl.u32 %v586, 7
    %v588 = vsub.s32 4, %v587
    %v589 = vrot.slane %v211, %v588
    %v590 = vlaneseq
    %v591 = vshrl.u32 %v590, 7
    %v592 = vsub.s32 0, %v591
    %v593 = vrot.slane %v212, %v592
    %v594 = vlaneseq
    %v595 = vshrl.u32 %v594, 7
    %v596 = vsub.s32 4, %v595
    %v597 = vrot.slane %v212, %v596
    %v598 = vlaneseq
    %v599 = vshrl.u32 %v598, 7
    %v600 = vsub.s32 0, %v599
    %v601 = vrot.slane %v585, %v600
    %v602 = vlaneseq
    %v603 = vshrl.u32 %v602, 7
    %v604 = vsub.s32 0, %v603
    %v605 = vrot.slane %v589, %v604
    %v606 = vlaneseq
    %v607 = vshrl.u32 %v606, 7
    %v608 = vsub.s32 0, %v607
    %v609 = vrot.slane %v593, %v608
    %v610 = vlaneseq
    %v611 = vshrl.u32 %v610, 7
    %v612 = vsub.s32 0, %v611
    %v613 = vrot.slane %v597, %v612
    %vm614 = vcmp.eq.s32.totalorder %v216, %v601
    %vm615 = vcmp.eq.s32.totalorder %v216, %v605
    %vm616 = vcmp.eq.s32.totalorder %v216, %v609
    %vm617 = vcmp.eq.s32.totalorder %v216, %v613
    %vm618 = vcmp.eq.s32.totalorder %v217, %v601
    %vm619 = vcmp.eq.s32.totalorder %v217, %v605
    %vm620 = vcmp.eq.s32.totalorder %v217, %v609
    %vm621 = vcmp.eq.s32.totalorder %v217, %v613
    %v622 = vsel %vm614, %v531, 0.0
    %v623 = vsel %vm615, %v533, 0.0
    %v624 = vsel %vm616, %v574, 0.0
    %v625 = vsel %vm617, %v576, 0.0
    %v626 = vsel %vm618, %v535, 0.0
    %v627 = vsel %vm619, %v537, 0.0
    %v628 = vsel %vm620, %v578, 0.0
    %v629 = vsel %vm621, %v580, 0.0
    %v630 = vadd.f32 %v622, %v626
    %v631 = vrot.slane %v630, 4
    %v632 = vadd.f32 %v630, %v631
    %v633 = vrot.slane %v632, 2
    %v634 = vadd.f32 %v632, %v633
    %v635 = vrot.slane %v634, 1
    %v636 = vadd.f32 %v634, %v635
    %v637 = vadd.f32 %v623, %v627
    %v638 = vrot.slane %v637, 4
    %v639 = vadd.f32 %v637, %v638
    %v640 = vrot.slane %v639, 2
    %v641 = vadd.f32 %v639, %v640
    %v642 = vrot.slane %v641, 1
    %v643 = vadd.f32 %v641, %v642
    %v644 = vadd.f32 %v624, %v628
    %v645 = vrot.slane %v644, 4
    %v646 = vadd.f32 %v644, %v645
    %v647 = vrot.slane %v646, 2
    %v648 = vadd.f32 %v646, %v647
    %v649 = vrot.slane %v648, 1
    %v650 = vadd.f32 %v648, %v649
    %v651 = vadd.f32 %v625, %v629
    %v652 = vrot.slane %v651, 4
    %v653 = vadd.f32 %v651, %v652
    %v654 = vrot.slane %v653, 2
    %v655 = vadd.f32 %v653, %v654
    %v656 = vrot.slane %v655, 1
    %v657 = vadd.f32 %v655, %v656
    %v658 = vcvt.f32.s32.to.zero.pseudo %v636
    %v659 = vcvt.f32.s32.to.zero.pseudo %v643
    %v660 = vcvt.f32.s32.to.zero.pseudo %v650
    %v661 = vcvt.f32.s32.to.zero.pseudo %v657
    %vm662 = vcmp.eq.s32.totalorder %v209, 0
    %vm663 = vcmp.eq.s32.totalorder %v210, 0
    %v664 = vand.u32 %v658, 1
    %v665 = vand.u32 %v659, 1
    %v666 = vand.u32 %v660, 1
    %v667 = vand.u32 %v661, 1
    %v668 = vcombine.low %v664, %v665
    %v669 = vcombine.low %v666, %v667
    %v670 = vrot.slane %v668, 6
    %v671 = vrot.slane %v669, 6
    %v672 = vsel %vm662, %v670, 0
    %v673 = vsel %vm663, %v671, 0
    %vm674 = vcmp.eq.s32.totalorder %v209, 1
    %vm675 = vcmp.eq.s32.totalorder %v210, 1
    %v676 = vshra.s32 %v658, 1
    %v677 = vshra.s32 %v659, 1
    %v678 = vshra.s32 %v660, 1
    %v679 = vshra.s32 %v661, 1
    %v680 = vand.u32 %v676, 1
    %v681 = vand.u32 %v677, 1
    %v682 = vand.u32 %v678, 1
    %v683 = vand.u32 %v679, 1
    %v684 = vcombine.low %v680, %v681
    %v685 = vcombine.low %v682, %v683
    %v686 = vrot.slane %v684, 6
    %v687 = vrot.slane %v685, 6
    %v688 = vsel %vm674, %v686, %v672
    %v689 = vsel %vm675, %v687, %v673
    %vm690 = vcmp.eq.s32.totalorder %v209, 2
    %vm691 = vcmp.eq.s32.totalorder %v210, 2
    %v692 = vshra.s32 %v658, 2
    %v693 = vshra.s32 %v659, 2
    %v694 = vshra.s32 %v660, 2
    %v695 = vshra.s32 %v661, 2
    %v696 = vand.u32 %v692, 1
    %v697 = vand.u32 %v693, 1
    %v698 = vand.u32 %v694, 1
    %v699 = vand.u32 %v695, 1
    %v700 = vcombine.low %v696, %v697
    %v701 = vcombine.low %v698, %v699
    %v702 = vrot.slane %v700, 6
    %v703 = vrot.slane %v701, 6
    %v704 = vsel %vm690, %v702, %v688
    %v705 = vsel %vm691, %v703, %v689
    %vm706 = vcmp.eq.s32.totalorder %v209, 3
    %vm707 = vcmp.eq.s32.totalorder %v210, 3
    %v708 = vshra.s32 %v658, 3
    %v709 = vshra.s32 %v659, 3
    %v710 = vshra.s32 %v660, 3
    %v711 = vshra.s32 %v661, 3
    %v712 = vand.u32 %v708, 1
    %v713 = vand.u32 %v709, 1
    %v714 = vand.u32 %v710, 1
    %v715 = vand.u32 %v711, 1
    %v716 = vcombine.low %v712, %v713
    %v717 = vcombine.low %v714, %v715
    %v718 = vrot.slane %v716, 6
    %v719 = vrot.slane %v717, 6
    %v720 = vsel %vm706, %v718, %v704
    %v721 = vsel %vm707, %v719, %v705
    %vm722 = vcmp.eq.s32.totalorder %v209, 4
    %vm723 = vcmp.eq.s32.totalorder %v210, 4
    %v724 = vshra.s32 %v658, 4
    %v725 = vshra.s32 %v659, 4
    %v726 = vshra.s32 %v660, 4
    %v727 = vshra.s32 %v661, 4
    %v728 = vand.u32 %v724, 1
    %v729 = vand.u32 %v725, 1
    %v730 = vand.u32 %v726, 1
    %v731 = vand.u32 %v727, 1
    %v732 = vcombine.low %v728, %v729
    %v733 = vcombine.low %v730, %v731
    %v734 = vrot.slane %v732, 6
    %v735 = vrot.slane %v733, 6
    %v736 = vsel %vm722, %v734, %v720
    %v737 = vsel %vm723, %v735, %v721
    %vm738 = vcmp.eq.s32.totalorder %v209, 5
    %vm739 = vcmp.eq.s32.totalorder %v210, 5
    %v740 = vshra.s32 %v658, 5
    %v741 = vshra.s32 %v659, 5
    %v742 = vshra.s32 %v660, 5
    %v743 = vshra.s32 %v661, 5
    %v744 = vand.u32 %v740, 1
    %v745 = vand.u32 %v741, 1
    %v746 = vand.u32 %v742, 1
    %v747 = vand.u32 %v743, 1
    %v748 = vcombine.low %v744, %v745
    %v749 = vcombine.low %v746, %v747
    %v750 = vrot.slane %v748, 6
    %v751 = vrot.slane %v749, 6
    %v752 = vsel %vm738, %v750, %v736
    %v753 = vsel %vm739, %v751, %v737
    %vm754 = vcmp.eq.s32.totalorder %v209, 6
    %vm755 = vcmp.eq.s32.totalorder %v210, 6
    %v756 = vshra.s32 %v658, 6
    %v757 = vshra.s32 %v659, 6
    %v758 = vshra.s32 %v660, 6
    %v759 = vshra.s32 %v661, 6
    %v760 = vand.u32 %v756, 1
    %v761 = vand.u32 %v757, 1
    %v762 = vand.u32 %v758, 1
    %v763 = vand.u32 %v759, 1
    %v764 = vcombine.low %v760, %v761
    %v765 = vcombine.low %v762, %v763
    %v766 = vrot.slane %v764, 6
    %v767 = vrot.slane %v765, 6
    %v768 = vsel %vm754, %v766, %v752
    %v769 = vsel %vm755, %v767, %v753
    %vm770 = vcmp.eq.s32.totalorder %v209, 7
    %vm771 = vcmp.eq.s32.totalorder %v210, 7
    %v772 = vshra.s32 %v658, 7
    %v773 = vshra.s32 %v659, 7
    %v774 = vshra.s32 %v660, 7
    %v775 = vshra.s32 %v661, 7
    %v776 = vand.u32 %v772, 1
    %v777 = vand.u32 %v773, 1
    %v778 = vand.u32 %v774, 1
    %v779 = vand.u32 %v775, 1
    %v780 = vcombine.low %v776, %v777
    %v781 = vcombine.low %v778, %v779
    %v782 = vrot.slane %v780, 6
    %v783 = vrot.slane %v781, 6
    %v784 = vsel %vm770, %v782, %v768
    %v785 = vsel %vm771, %v783, %v769
    %vm786 = vcmp.eq.s32.totalorder %v784, 1
    %vm787 = vcmp.eq.s32.totalorder %v785, 1
    %v788 = vsel %vm786, 1, 0
    %v789 = vsel %vm787, 1, 0
    %v790 = vrot.slane %v788, 6
    %v791 = vrot.slane %v790, 4
    %v792 = vrot.slane %v789, 6
    %v793 = vrot.slane %v792, 4
    %vm794 = vcmp.ne.s32.totalorder %v791, 0
    %vm795 = vcmp.ne.s32.totalorder %v793, 0
    %vm796 = vmand %vm165, %vm794
    %vm797 = vmand %vm166, %vm795
    %v798 = vsel %vm796, 1, 0
    %v799 = vsel %vm797, 1, 0
    %v800 = vpack.c.b16 %v799, %v798
    %v801 = vpack.c.b8 %v800, %v800
    %vm802 = vnez %v801
    %v803 = vsel %vm802, 16843009, 0
    %v805 = vunpack.c.l.s4 1966171168
    %v806 = vunpack.c.0.s8 %v805
    %v807 = vlaneseq
    %v808 = vshrl.u32 %v807, 7
    %v809 = vsub.s32 %v806, %v808
    %v810 = vrot.slane %v803, %v809
    %v811 = vcombine.high %v810, %v810
    %v813 = vunpack.c.l.s4 1966171168
    %v814 = vunpack.c.0.s8 %v813
    %v815 = vlaneseq
    %v816 = vshrl.u32 %v815, 7
    %v817 = vsub.s32 %v814, %v816
    %v818 = vrot.slane %v810, %v817
    %v820 = vunpack.c.l.s4 1966171168
    %v821 = vunpack.c.0.s8 %v820
    %v822 = vlaneseq
    %v823 = vshrl.u32 %v822, 7
    %v824 = vsub.s32 %v821, %v823
    %v825 = vrot.slane %v811, %v824
    %v826 = vcombine.high %v818, %v818
    %v827 = vcombine.high %v825, %v825
    %vm828 = vnez %v818
    %vm829 = vnez %v825
    %vm830 = vnez %v826
    %vm831 = vnez %v827
    %v832 = vsel %vm828, 16843009, 0
    %v833 = vsel %vm829, 16843009, 0
    %v834 = vsel %vm830, 16843009, 0
    %v835 = vsel %vm831, 16843009, 0
    %v836 = vcombine.low %v832, %v833
    %v837 = vcombine.low %v834, %v835
    %v839 = vunpack.c.l.s4 1966171168
    %v840 = vunpack.c.0.s8 %v839
    %v841 = vlaneseq
    %v842 = vshrl.u32 %v841, 7
    %v843 = vsub.s32 %v840, %v842
    %v844 = vrot.slane %v836, %v843
    %v846 = vunpack.c.l.s4 1966171168
    %v847 = vunpack.c.0.s8 %v846
    %v848 = vlaneseq
    %v849 = vshrl.u32 %v848, 7
    %v850 = vsub.s32 %v847, %v849
    %v851 = vrot.slane %v837, %v850
    %v852 = vcombine.low %v844, %v851
    %v854 = vunpack.c.l.s4 1966171168
    %v855 = vunpack.c.0.s8 %v854
    %v856 = vlaneseq
    %v857 = vshrl.u32 %v856, 7
    %v858 = vsub.s32 %v855, %v857
    %v859 = vrot.slane %v852, %v858
    %vm860 = vcmask 1040384
    %vm861 = vsmask.f32 0
    %vm862 = vmand %vm860, %vm861
    %vm863 = vcmask 1041409
    %vm864 = vsmask.f32 1024
    %vm865 = vmand %vm863, %vm864
    %vm866 = vmor %vm865, %vm862
    %vm867 = vcmask 1042434
    %vm868 = vsmask.f32 2048
    %vm869 = vmand %vm867, %vm868
    %vm870 = vmor %vm869, %vm866
    %vm871 = vcmask 1043459
    %vm872 = vsmask.f32 3072
    %vm873 = vmand %vm871, %vm872
    %vm874 = vmor %vm873, %vm870
    %v875 = vld [vmem:[%s4] sm:$0xf]
    %v876 = vsel %vm874, %v859, %v875
    %877 = vst [vmem:[%s4] sm:$0xf] %v876
    // Predicated region
    $region26: #{_lookup_packed.1} parent=1 // pred_check
      _
    $region27: #{_lookup_packed.1} parent=1 // pred_check_branch
      %879 = sbr.rel (0) target = $region29
    $region28: #{_lookup_packed.1} parent=1 // pred_region
      _
    $region29: #{_lookup_packed.1} parent=1 // pred_fallthru
      _
    // Predicated region
    $region30: #{_lookup_packed.1} parent=1 // pred_check
      _
    $region31: #{_lookup_packed.1} parent=1 // pred_check_branch
      %881 = sbr.rel (0) target = $region33
    $region32: #{_lookup_packed.1} parent=1 // pred_region
      _
    $region33: #{_lookup_packed.1} parent=1 // pred_fallthru
      _
    %882 = vsyncpa [#allocation3], 1
    %883 = vsyncpa [#allocation5], 1

</llo_original>
